<compile_context>
chip_gen: v5e
topology: v5e:2x2
jax: 0.10.0
libtpu: 0.0.40
codegen_flags: <defaults>
</compile_context>

<pallas_src>
import functools

import jax
import jax.numpy as jnp
from jax.experimental import pallas as pl
from jax.experimental.pallas import tpu as pltpu

ALPHA = 1.0
BETA = 0.1
TB = 8          # users per grid step (full 8-row sublane tile)


# ----------------------------------------------------------------------------- kernel
def _fused_kernel(x_ref, m_ref, wcoef_ref, invcnt_ref, wt_ref, wct_ref, emb_ref,
                  out_ref):
    """Fused SFCNTSP forward for TB users.

    x_ref:      (TB, L, S*C)  gathered item embeddings, lane-dense
    m_ref:      (TB, L, S*C)  binary (set AND time) validity mask, expanded over C
    wcoef_ref:  (TB, L, 1)    alpha + beta * inv_set_size * n_valid_elems
    invcnt_ref: (TB, 1)       1 / number of valid (time, element) positions
    wt_ref:     (L, L)        temporal FC weight (out_t, in_t), bias=False
    wct_ref:    (C, S*C)      channel FC weight tiled S times along the lane dim
    emb_ref:    (N_pad, C)    zero-padded items embedding
    out_ref:    (TB, N_pad)   per-user scores over all items
    """
    tb, L, SC = x_ref.shape

    m = m_ref[...]                                   # hoisted: reused twice
    xm = x_ref[...] * m                              # zero padded elements / steps

    # --- TemporalDependencies: bias-free FC over the time axis, batched users.
    wtb = jnp.broadcast_to(wt_ref[...][None, :, :], (tb, L, L))
    y1 = jnp.einsum("btl,bld->btd", wtb, xm,
                    preferred_element_type=jnp.float32)          # (TB, L, SC)

    # --- ElementRelationships fused with the masked (time, element) pooling of
    #     RepresentationsFusing.  With y2 = (alpha*y1 + beta*set_mean)*smask:
    #       sum_{l,s} y2[.,c] = sum_l set_sum[l,c] * (alpha + beta*inv_size*n_valid)
    #     where set_sum[l,c] = sum_s smask[l,s]*y1[l,s,c].  In lane-dense form:
    q = jnp.sum(y1 * m * wcoef_ref[...], axis=1)                 # (TB, SC)

    # --- ChannelCorrelations folded after pooling (exact: y2 is mask-zeroed):
    #       pooled @ Wc^T  ==  q @ tile(Wc, S)^T
    u = jax.lax.dot_general(q, wct_ref[...], (((1,), (1,)), ((), ())),
                            preferred_element_type=jnp.float32)  # (TB, C)
    u = u * invcnt_ref[...]                                      # masked mean

    # --- score pooled user representation against the (zero-padded) items.
    out_ref[...] = jax.lax.dot_general(u, emb_ref[...], (((1,), (1,)), ((), ())),
                                       preferred_element_type=jnp.float32)


# ----------------------------------------------------------------------------- params
def init_params(key, num_items, max_seq_length, embedding_channels):
    k0, k1, k2 = jax.random.split(key, 3)
    return {
        "items_embedding": jax.random.normal(
            k0, (num_items, embedding_channels), jnp.float32),
        "w_temporal": jax.random.normal(
            k1, (max_seq_length, max_seq_length), jnp.float32) / max_seq_length,
        "w_channel": jax.random.normal(
            k2, (embedding_channels, embedding_channels), jnp.float32)
            / jnp.sqrt(float(embedding_channels)),
    }


# ----------------------------------------------------------------------------- wrapper
@functools.partial(jax.jit, static_argnames=("tb",))
def sfcntsp_forward(params, batch_seq_length, batch_set_size, batch_input_data,
                    tb=TB):
    """batch_input_data: (B, L, S) int32 item ids (padded positions masked out)."""
    # TODO(synk): batch_items_id (per-user unique-item gather/scatter fusing in the
    # original RepresentationsFusing) is ragged and has no clean tensor form here;
    # prediction is done directly from the pooled user representation against the
    # full items_embedding.
    emb = params["items_embedding"]          # (N, C)
    wt = params["w_temporal"].astype(jnp.float32)     # (L, L)
    wc = params["w_channel"].astype(jnp.float32)      # (C, C)

    B, L, S = batch_input_data.shape
    N, C = emb.shape
    SC = S * C

    # glue: embedding lookup (inference dropout == identity), lane-dense layout
    x = emb[batch_input_data].astype(jnp.float32).reshape(B, L, SC)

    # masks / per-(b, l) scalars (mask bookkeeping stays in the wrapper)
    seq_len = batch_seq_length.astype(jnp.int32)                   # (B,)
    set_size = batch_set_size.astype(jnp.int32)                    # (B, L)
    tmask = (jnp.arange(L)[None, :] < seq_len[:, None]).astype(jnp.float32)          # (B, L)
    smask = (jnp.arange(S)[None, None, :] < set_size[:, :, None]).astype(jnp.float32)
    smask = smask * tmask[:, :, None]                              # (B, L, S), AND-ed
    m = jnp.broadcast_to(smask[:, :, :, None], (B, L, S, C)).reshape(B, L, SC)

    nvalid = jnp.sum(smask, axis=-1)                               # (B, L)
    inv_size = tmask / jnp.maximum(set_size.astype(jnp.float32), 1.0)
    wcoef = (ALPHA + BETA * inv_size * nvalid)[..., None]          # (B, L, 1)
    inv_count = (1.0 / jnp.maximum(jnp.sum(smask, axis=(1, 2)), 1.0))[:, None]  # (B, 1)

    # weight preprocessing: fold channel FC after pooling; pad items to lane width
    wct = jnp.tile(wc, (1, S))                                     # (C, S*C)
    n_pad = ((N + 127) // 128) * 128
    emb_pad = jnp.pad(emb.astype(jnp.float32), ((0, n_pad - N), (0, 0)))

    # pad batch to a multiple of TB (padded rows are fully masked -> zero scores)
    b_pad = ((B + tb - 1) // tb) * tb
    if b_pad != B:
        pad = b_pad - B
        x = jnp.pad(x, ((0, pad), (0, 0), (0, 0)))
        m = jnp.pad(m, ((0, pad), (0, 0), (0, 0)))
        wcoef = jnp.pad(wcoef, ((0, pad), (0, 0), (0, 0)))
        inv_count = jnp.pad(inv_count, ((0, pad), (0, 0)))

    out = pl.pallas_call(
        _fused_kernel,
        out_shape=jax.ShapeDtypeStruct((b_pad, n_pad), jnp.float32),
        grid=(b_pad // tb,),
        in_specs=[
            pl.BlockSpec((tb, L, SC), lambda b: (b, 0, 0)),   # x
            pl.BlockSpec((tb, L, SC), lambda b: (b, 0, 0)),   # mask
            pl.BlockSpec((tb, L, 1), lambda b: (b, 0, 0)),    # wcoef
            pl.BlockSpec((tb, 1), lambda b: (b, 0)),          # inv_count
            pl.BlockSpec((L, L), lambda b: (0, 0)),           # W_T
            pl.BlockSpec((C, SC), lambda b: (0, 0)),          # tiled W_C
            pl.BlockSpec((n_pad, C), lambda b: (0, 0)),       # padded items emb
        ],
        out_specs=pl.BlockSpec((tb, n_pad), lambda b: (b, 0)),
        compiler_params=pltpu.CompilerParams(dimension_semantics=("parallel",)),
    )(x, m, wcoef, inv_count, wt, wct, emb_pad)

    return out[:B, :N]                                             # (B, num_items)


# ----------------------------------------------------------------------------- reference
def _reference(params, seq_len, set_size, ids):
    emb, wt, wc = params["items_embedding"], params["w_temporal"], params["w_channel"]
    B, L, S = ids.shape
    x = emb[ids].astype(jnp.float32)
    tmask = (jnp.arange(L)[None, :] < seq_len[:, None]).astype(jnp.float32)
    smask = (jnp.arange(S)[None, None, :] < set_size[:, :, None]).astype(jnp.float32)
    smask = smask * tmask[:, :, None]
    inv_size = tmask / jnp.maximum(set_size.astype(jnp.float32), 1.0)

    xm = x * smask[..., None] * tmask[:, :, None, None]
    y1 = jnp.einsum("tu,busc->btsc", wt, xm)
    set_mean = (y1 * smask[..., None]).sum(2, keepdims=True) * inv_size[:, :, None, None]
    y2 = (ALPHA * y1 + BETA * set_mean) * smask[..., None]
    y3 = jnp.einsum("blsc,dc->blsd", y2, wc)

    mask = smask * tmask[:, :, None]
    count = jnp.maximum(mask.sum((1, 2)), 1.0)
    u = (y3 * mask[..., None]).sum((1, 2)) / count[:, None]
    return u @ emb.T


# ----------------------------------------------------------------------------- main
if __name__ == "__main__":
    # batch, max_seq_len, max_set_size, channels, items  (S*C = 128 lane-dense)
    B, L, S, C, N = 16, 8, 4, 32, 64

    key = jax.random.PRNGKey(0)
    kp, ki, ks, kl = jax.random.split(key, 4)
    params = init_params(kp, num_items=N, max_seq_length=L, embedding_channels=C)

    batch_input_data = jax.random.randint(ki, (B, L, S), 0, N, dtype=jnp.int32)
    batch_seq_length = jax.random.randint(kl, (B,), 1, L + 1, dtype=jnp.int32)
    batch_set_size = jax.random.randint(ks, (B, L), 1, S + 1, dtype=jnp.int32)
    batch_items_id = [jnp.unique(batch_input_data[b]) for b in range(B)]  # unused (see TODO)

    out = sfcntsp_forward(params, batch_seq_length, batch_set_size, batch_input_data)
    out = jax.block_until_ready(out)

    ref = _reference(params, batch_seq_length, batch_set_size, batch_input_data)
    assert out.shape == (B, N), out.shape
    err = float(jnp.max(jnp.abs(out - ref)))
    assert jnp.allclose(out, ref, atol=2e-3, rtol=2e-3), err

    print("KERNEL_OK")
</pallas_src>

<mosaic_0001>
module attributes {stable_mosaic.version = 11 : i64} {
  func.func @_fused_kernel(%arg0: i32, %arg1: memref<8x8x128xf32, #tpu.memory_space<vmem>>, %arg2: memref<8x8x128xf32, #tpu.memory_space<vmem>>, %arg3: memref<8x8x1xf32, #tpu.memory_space<vmem>>, %arg4: memref<8x1xf32, #tpu.memory_space<vmem>>, %arg5: memref<8x8xf32, #tpu.memory_space<vmem>>, %arg6: memref<32x128xf32, #tpu.memory_space<vmem>>, %arg7: memref<128x32xf32, #tpu.memory_space<vmem>>, %arg8: memref<8x128xf32, #tpu.memory_space<vmem>>) attributes {dimension_semantics = [#tpu.dimension_semantics<parallel>], iteration_bounds = array<i64: 2>, scalar_prefetch = 0 : i64, scratch_operands = 0 : i64, tpu.core_type = #tpu.core_type<tc>, window_params = [{transform_indices = @transform_0, window_bounds = array<i64: 8, 8, 128>}, {transform_indices = @transform_1, window_bounds = array<i64: 8, 8, 128>}, {transform_indices = @transform_2, window_bounds = array<i64: 8, 8, 1>}, {transform_indices = @transform_3, window_bounds = array<i64: 8, 1>}, {pipeline_mode = #tpu.pipeline_mode<synchronous>, transform_indices = @transform_4, window_bounds = array<i64: 8, 8>}, {pipeline_mode = #tpu.pipeline_mode<synchronous>, transform_indices = @transform_5, window_bounds = array<i64: 32, 128>}, {pipeline_mode = #tpu.pipeline_mode<synchronous>, transform_indices = @transform_6, window_bounds = array<i64: 128, 32>}, {transform_indices = @transform_7, window_bounds = array<i64: 8, 128>}]} {
    %c0 = arith.constant 0 : index
    %c0_0 = arith.constant 0 : index
    %c0_1 = arith.constant 0 : index
    %0 = vector.load %arg2[%c0, %c0_0, %c0_1] : memref<8x8x128xf32, #tpu.memory_space<vmem>>, vector<8x8x128xf32>
    %c0_2 = arith.constant 0 : index
    %c0_3 = arith.constant 0 : index
    %c0_4 = arith.constant 0 : index
    %1 = vector.load %arg1[%c0_2, %c0_3, %c0_4] : memref<8x8x128xf32, #tpu.memory_space<vmem>>, vector<8x8x128xf32>
    %2 = arith.mulf %1, %0 : vector<8x8x128xf32>
    %c0_5 = arith.constant 0 : index
    %c0_6 = arith.constant 0 : index
    %3 = vector.load %arg5[%c0_5, %c0_6] : memref<8x8xf32, #tpu.memory_space<vmem>>, vector<8x8xf32>
    %4 = vector.shape_cast %3 : vector<8x8xf32> to vector<1x8x8xf32>
    %5 = vector.shape_cast %4 : vector<1x8x8xf32> to vector<1x8x8xf32>
    %6 = vector.broadcast %5 : vector<1x8x8xf32> to vector<8x8x8xf32>
    "tpu.trace_start"() <{level = 10 : i32, message = "btl,bld->btd"}> : () -> ()
    %cst = arith.constant dense<0.000000e+00> : vector<8x8x128xf32>
    %7 = tpu.matmul %6, %2, %cst {dimension_numbers = #tpu.dot_dimension_numbers<[2], [1], [1], [2], [0, 0, 0, 1, 1, 2], [0], [0]>} : vector<8x8x8xf32>, vector<8x8x128xf32>, vector<8x8x128xf32> -> vector<8x8x128xf32>
    "tpu.trace_stop"() : () -> ()
    %8 = arith.mulf %7, %0 : vector<8x8x128xf32>
    %c0_7 = arith.constant 0 : index
    %c0_8 = arith.constant 0 : index
    %c0_9 = arith.constant 0 : index
    %9 = vector.load %arg3[%c0_7, %c0_8, %c0_9] : memref<8x8x1xf32, #tpu.memory_space<vmem>>, vector<8x8x1xf32>
    %10 = vector.broadcast %9 : vector<8x8x1xf32> to vector<8x8x128xf32>
    %11 = arith.mulf %8, %10 : vector<8x8x128xf32>
    %cst_10 = arith.constant dense<0.000000e+00> : vector<8x128xf32>
    %12 = vector.multi_reduction <add>, %11, %cst_10 [1] : vector<8x8x128xf32> to vector<8x128xf32>
    %c0_11 = arith.constant 0 : index
    %c0_12 = arith.constant 0 : index
    %13 = vector.load %arg6[%c0_11, %c0_12] : memref<32x128xf32, #tpu.memory_space<vmem>>, vector<32x128xf32>
    %cst_13 = arith.constant dense<0.000000e+00> : vector<8x32xf32>
    %14 = tpu.matmul %12, %13, %cst_13 {dimension_numbers = #tpu.dot_dimension_numbers<[1], [1], [0], [0], [0, 0, 1, 0], [], []>} : vector<8x128xf32>, vector<32x128xf32>, vector<8x32xf32> -> vector<8x32xf32>
    %c0_14 = arith.constant 0 : index
    %c0_15 = arith.constant 0 : index
    %15 = vector.load %arg4[%c0_14, %c0_15] : memref<8x1xf32, #tpu.memory_space<vmem>>, vector<8x1xf32>
    %16 = vector.broadcast %15 : vector<8x1xf32> to vector<8x32xf32>
    %17 = arith.mulf %14, %16 : vector<8x32xf32>
    %c0_16 = arith.constant 0 : index
    %c0_17 = arith.constant 0 : index
    %18 = vector.load %arg7[%c0_16, %c0_17] : memref<128x32xf32, #tpu.memory_space<vmem>>, vector<128x32xf32>
    %cst_18 = arith.constant dense<0.000000e+00> : vector<8x128xf32>
    %19 = tpu.matmul %17, %18, %cst_18 {dimension_numbers = #tpu.dot_dimension_numbers<[1], [1], [0], [0], [0, 0, 1, 0], [], []>} : vector<8x32xf32>, vector<128x32xf32>, vector<8x128xf32> -> vector<8x128xf32>
    %c0_19 = arith.constant 0 : index
    %c0_20 = arith.constant 0 : index
    %20 = vector.load %arg8[%c0_19, %c0_20] : memref<8x128xf32, #tpu.memory_space<vmem>>, vector<8x128xf32>
    tpu.vector_store %arg8[%c0_19, %c0_20], %19 {strides = array<i32>} : memref<8x128xf32, #tpu.memory_space<vmem>>, vector<8x128xf32>,
    return
  }
  func.func @transform_0(%arg0: i32) -> (i32, i32, i32) {
    %c0_i32 = arith.constant 0 : i32
    %c0_i32_0 = arith.constant 0 : i32
    %c0_i32_1 = arith.constant 0 : i32
    return %arg0, %c0_i32, %c0_i32_0 : i32, i32, i32
  }
  func.func @transform_1(%arg0: i32) -> (i32, i32, i32) {
    %c0_i32 = arith.constant 0 : i32
    %c0_i32_0 = arith.constant 0 : i32
    %c0_i32_1 = arith.constant 0 : i32
    return %arg0, %c0_i32, %c0_i32_0 : i32, i32, i32
  }
  func.func @transform_2(%arg0: i32) -> (i32, i32, i32) {
    %c0_i32 = arith.constant 0 : i32
    %c0_i32_0 = arith.constant 0 : i32
    %c0_i32_1 = arith.constant 0 : i32
    return %arg0, %c0_i32, %c0_i32_0 : i32, i32, i32
  }
  func.func @transform_3(%arg0: i32) -> (i32, i32) {
    %c0_i32 = arith.constant 0 : i32
    %c0_i32_0 = arith.constant 0 : i32
    return %arg0, %c0_i32 : i32, i32
  }
  func.func @transform_4(%arg0: i32) -> (i32, i32) {
    %c0_i32 = arith.constant 0 : i32
    %c0_i32_0 = arith.constant 0 : i32
    %c0_i32_1 = arith.constant 0 : i32
    return %c0_i32, %c0_i32_0 : i32, i32
  }
  func.func @transform_5(%arg0: i32) -> (i32, i32) {
    %c0_i32 = arith.constant 0 : i32
    %c0_i32_0 = arith.constant 0 : i32
    %c0_i32_1 = arith.constant 0 : i32
    return %c0_i32, %c0_i32_0 : i32, i32
  }
  func.func @transform_6(%arg0: i32) -> (i32, i32) {
    %c0_i32 = arith.constant 0 : i32
    %c0_i32_0 = arith.constant 0 : i32
    %c0_i32_1 = arith.constant 0 : i32
    return %c0_i32, %c0_i32_0 : i32, i32
  }
  func.func @transform_7(%arg0: i32) -> (i32, i32) {
    %c0_i32 = arith.constant 0 : i32
    %c0_i32_0 = arith.constant 0 : i32
    return %arg0, %c0_i32 : i32, i32
  }
}

</mosaic_0001>

<llo_original>
// kernel: tile.9
$region0: #{tile.9}
  %s0 = inlined_call_operand.vmem [shape: f32[32,4,32], index: 0, kind: input, shape index: {}]
  %s1 = inlined_call_operand.vmem [shape: f32[32,128], index: 1, kind: output, shape index: {}]
  $region1: #{tile.9} parent=0
    #allocation0 [shape = 'u8[131072]{0}', space=vmem, size = 0x20000, scoped, tag = 'scoped mem for input reshape']
    %s3 = ssub.s32 16, 1
    %s4 = scalar_lea.vmem %s0, 124
    %v5 = vld [vmem:[%s4] sm:%s3]
    %s6 = scalar_lea.vmem [#allocation0], 248
    %7 = vst [vmem:[%s6] sm:%s3] %v5
    %s8 = scalar_lea.vmem %s0, 120
    %v9 = vld [vmem:[%s8] sm:%s3]
    %s10 = scalar_lea.vmem [#allocation0], 240
    %11 = vst [vmem:[%s10] sm:%s3] %v9
    %s12 = scalar_lea.vmem %s0, 116
    %v13 = vld [vmem:[%s12] sm:%s3]
    %s14 = scalar_lea.vmem [#allocation0], 232
    %15 = vst [vmem:[%s14] sm:%s3] %v13
    %s16 = scalar_lea.vmem %s0, 112
    %v17 = vld [vmem:[%s16] sm:%s3]
    %s18 = scalar_lea.vmem [#allocation0], 224
    %19 = vst [vmem:[%s18] sm:%s3] %v17
    %s20 = scalar_lea.vmem %s0, 108
    %v21 = vld [vmem:[%s20] sm:%s3]
    %s22 = scalar_lea.vmem [#allocation0], 216
    %23 = vst [vmem:[%s22] sm:%s3] %v21
    %s24 = scalar_lea.vmem %s0, 104
    %v25 = vld [vmem:[%s24] sm:%s3]
    %s26 = scalar_lea.vmem [#allocation0], 208
    %27 = vst [vmem:[%s26] sm:%s3] %v25
    %s28 = scalar_lea.vmem %s0, 100
    %v29 = vld [vmem:[%s28] sm:%s3]
    %s30 = scalar_lea.vmem [#allocation0], 200
    %31 = vst [vmem:[%s30] sm:%s3] %v29
    %s32 = scalar_lea.vmem %s0, 96
    %v33 = vld [vmem:[%s32] sm:%s3]
    %s34 = scalar_lea.vmem [#allocation0], 192
    %35 = vst [vmem:[%s34] sm:%s3] %v33
    %s36 = scalar_lea.vmem %s0, 92
    %v37 = vld [vmem:[%s36] sm:%s3]
    %s38 = scalar_lea.vmem [#allocation0], 184
    %39 = vst [vmem:[%s38] sm:%s3] %v37
    %s40 = scalar_lea.vmem %s0, 88
    %v41 = vld [vmem:[%s40] sm:%s3]
    %s42 = scalar_lea.vmem [#allocation0], 176
    %43 = vst [vmem:[%s42] sm:%s3] %v41
    %s44 = scalar_lea.vmem %s0, 84
    %v45 = vld [vmem:[%s44] sm:%s3]
    %s46 = scalar_lea.vmem [#allocation0], 168
    %47 = vst [vmem:[%s46] sm:%s3] %v45
    %s48 = scalar_lea.vmem %s0, 80
    %v49 = vld [vmem:[%s48] sm:%s3]
    %s50 = scalar_lea.vmem [#allocation0], 160
    %51 = vst [vmem:[%s50] sm:%s3] %v49
    %s52 = scalar_lea.vmem %s0, 76
    %v53 = vld [vmem:[%s52] sm:%s3]
    %s54 = scalar_lea.vmem [#allocation0], 152
    %55 = vst [vmem:[%s54] sm:%s3] %v53
    %s56 = scalar_lea.vmem %s0, 72
    %v57 = vld [vmem:[%s56] sm:%s3]
    %s58 = scalar_lea.vmem [#allocation0], 144
    %59 = vst [vmem:[%s58] sm:%s3] %v57
    %s60 = scalar_lea.vmem %s0, 68
    %v61 = vld [vmem:[%s60] sm:%s3]
    %s62 = scalar_lea.vmem [#allocation0], 136
    %63 = vst [vmem:[%s62] sm:%s3] %v61
    %s64 = scalar_lea.vmem %s0, 64
    %v65 = vld [vmem:[%s64] sm:%s3]
    %s66 = scalar_lea.vmem [#allocation0], 128
    %67 = vst [vmem:[%s66] sm:%s3] %v65
    %s68 = scalar_lea.vmem %s0, 60
    %v69 = vld [vmem:[%s68] sm:%s3]
    %s70 = scalar_lea.vmem [#allocation0], 120
    %71 = vst [vmem:[%s70] sm:%s3] %v69
    %s72 = scalar_lea.vmem %s0, 56
    %v73 = vld [vmem:[%s72] sm:%s3]
    %s74 = scalar_lea.vmem [#allocation0], 112
    %75 = vst [vmem:[%s74] sm:%s3] %v73
    %s76 = scalar_lea.vmem %s0, 52
    %v77 = vld [vmem:[%s76] sm:%s3]
    %s78 = scalar_lea.vmem [#allocation0], 104
    %79 = vst [vmem:[%s78] sm:%s3] %v77
    %s80 = scalar_lea.vmem %s0, 48
    %v81 = vld [vmem:[%s80] sm:%s3]
    %s82 = scalar_lea.vmem [#allocation0], 96
    %83 = vst [vmem:[%s82] sm:%s3] %v81
    %s84 = scalar_lea.vmem %s0, 44
    %v85 = vld [vmem:[%s84] sm:%s3]
    %s86 = scalar_lea.vmem [#allocation0], 88
    %87 = vst [vmem:[%s86] sm:%s3] %v85
    %s88 = scalar_lea.vmem %s0, 40
    %v89 = vld [vmem:[%s88] sm:%s3]
    %s90 = scalar_lea.vmem [#allocation0], 80
    %91 = vst [vmem:[%s90] sm:%s3] %v89
    %s92 = scalar_lea.vmem %s0, 36
    %v93 = vld [vmem:[%s92] sm:%s3]
    %s94 = scalar_lea.vmem [#allocation0], 72
    %95 = vst [vmem:[%s94] sm:%s3] %v93
    %s96 = scalar_lea.vmem %s0, 32
    %v97 = vld [vmem:[%s96] sm:%s3]
    %s98 = scalar_lea.vmem [#allocation0], 64
    %99 = vst [vmem:[%s98] sm:%s3] %v97
    %s100 = scalar_lea.vmem %s0, 28
    %v101 = vld [vmem:[%s100] sm:%s3]
    %s102 = scalar_lea.vmem [#allocation0], 56
    %103 = vst [vmem:[%s102] sm:%s3] %v101
    %s104 = scalar_lea.vmem %s0, 24
    %v105 = vld [vmem:[%s104] sm:%s3]
    %s106 = scalar_lea.vmem [#allocation0], 48
    %107 = vst [vmem:[%s106] sm:%s3] %v105
    %s108 = scalar_lea.vmem %s0, 20
    %v109 = vld [vmem:[%s108] sm:%s3]
    %s110 = scalar_lea.vmem [#allocation0], 40
    %111 = vst [vmem:[%s110] sm:%s3] %v109
    %s112 = scalar_lea.vmem %s0, 16
    %v113 = vld [vmem:[%s112] sm:%s3]
    %s114 = scalar_lea.vmem [#allocation0], 32
    %115 = vst [vmem:[%s114] sm:%s3] %v113
    %s116 = scalar_lea.vmem %s0, 12
    %v117 = vld [vmem:[%s116] sm:%s3]
    %s118 = scalar_lea.vmem [#allocation0], 24
    %119 = vst [vmem:[%s118] sm:%s3] %v117
    %s120 = scalar_lea.vmem %s0, 8
    %v121 = vld [vmem:[%s120] sm:%s3]
    %s122 = scalar_lea.vmem [#allocation0], 16
    %123 = vst [vmem:[%s122] sm:%s3] %v121
    %s124 = scalar_lea.vmem %s0, 4
    %v125 = vld [vmem:[%s124] sm:%s3]
    %s126 = scalar_lea.vmem [#allocation0], 8
    %127 = vst [vmem:[%s126] sm:%s3] %v125
    %v128 = vld [vmem:[%s0] sm:%s3]
    %129 = vst [vmem:[#allocation0] sm:%s3] %v128
    %v130 = vld [vmem:[#allocation0] ss:$8 sm:$0xf]
    %v131 = vld [vmem:[#allocation0] ss:$8 sm:$0xf0]
    %vm132 = vcmask 1047556
    %v133 = vsel %vm132, %v131, %v130
    %vm134 = vcmask 261120
    %135 = vst.msk [vmem:[%s1] sm:$0xff] %vm134, %v133
    %s136 = scalar_lea.vmem [#allocation0], 64
    %v137 = vld [vmem:[%s136] ss:$8 sm:$0xf]
    %s138 = scalar_lea.vmem [#allocation0], 64
    %v139 = vld [vmem:[%s138] ss:$8 sm:$0xf0]
    %vm140 = vcmask 1047556
    %v141 = vsel %vm140, %v139, %v137
    %vm142 = vcmask 261120
    %s143 = scalar_lea.vmem %s1, 8
    %144 = vst.msk [vmem:[%s143] sm:$0xff] %vm142, %v141
    %s145 = scalar_lea.vmem [#allocation0], 128
    %v146 = vld [vmem:[%s145] ss:$8 sm:$0xf]
    %s147 = scalar_lea.vmem [#allocation0], 128
    %v148 = vld [vmem:[%s147] ss:$8 sm:$0xf0]
    %vm149 = vcmask 1047556
    %v150 = vsel %vm149, %v148, %v146
    %vm151 = vcmask 261120
    %s152 = scalar_lea.vmem %s1, 16
    %153 = vst.msk [vmem:[%s152] sm:$0xff] %vm151, %v150
    %s154 = scalar_lea.vmem [#allocation0], 192
    %v155 = vld [vmem:[%s154] ss:$8 sm:$0xf]
    %s156 = scalar_lea.vmem [#allocation0], 192
    %v157 = vld [vmem:[%s156] ss:$8 sm:$0xf0]
    %vm158 = vcmask 1047556
    %v159 = vsel %vm158, %v157, %v155
    %vm160 = vcmask 261120
    %s161 = scalar_lea.vmem %s1, 24
    %162 = vst.msk [vmem:[%s161] sm:$0xff] %vm160, %v159
    %s163 = scalar_lea.vmem [#allocation0], 3
    %v164 = vld [vmem:[%s163] ss:$8 sm:$0xf]
    %s165 = scalar_lea.vmem [#allocation0], 3
    %v166 = vld [vmem:[%s165] ss:$8 sm:$0xf0]
    %vm167 = vcmask 1047556
    %v168 = vsel %vm167, %v166, %v164
    %169 = vrot.lane.b32.xlu0 %v168, 96
    %v170 = vpop.permute.xlu0 %169
    %vm171 = vcmask 1048320
    %172 = vst.msk [vmem:[%s1] sm:$0xff] %vm171, %v170
    %s173 = scalar_lea.vmem [#allocation0], 67
    %v174 = vld [vmem:[%s173] ss:$8 sm:$0xf]
    %s175 = scalar_lea.vmem [#allocation0], 67
    %v176 = vld [vmem:[%s175] ss:$8 sm:$0xf0]
    %vm177 = vcmask 1047556
    %v178 = vsel %vm177, %v176, %v174
    %179 = vrot.lane.b32.xlu0 %v178, 96
    %v180 = vpop.permute.xlu0 %179
    %vm181 = vcmask 1048320
    %s182 = scalar_lea.vmem %s1, 8
    %183 = vst.msk [vmem:[%s182] sm:$0xff] %vm181, %v180
    %s184 = scalar_lea.vmem [#allocation0], 131
    %v185 = vld [vmem:[%s184] ss:$8 sm:$0xf]
    %s186 = scalar_lea.vmem [#allocation0], 131
    %v187 = vld [vmem:[%s186] ss:$8 sm:$0xf0]
    %vm188 = vcmask 1047556
    %v189 = vsel %vm188, %v187, %v185
    %190 = vrot.lane.b32.xlu0 %v189, 96
    %v191 = vpop.permute.xlu0 %190
    %vm192 = vcmask 1048320
    %s193 = scalar_lea.vmem %s1, 16
    %194 = vst.msk [vmem:[%s193] sm:$0xff] %vm192, %v191
    %s195 = scalar_lea.vmem [#allocation0], 195
    %v196 = vld [vmem:[%s195] ss:$8 sm:$0xf]
    %s197 = scalar_lea.vmem [#allocation0], 195
    %v198 = vld [vmem:[%s197] ss:$8 sm:$0xf0]
    %vm199 = vcmask 1047556
    %v200 = vsel %vm199, %v198, %v196
    %201 = vrot.lane.b32.xlu0 %v200, 96
    %v202 = vpop.permute.xlu0 %201
    %vm203 = vcmask 1048320
    %s204 = scalar_lea.vmem %s1, 24
    %205 = vst.msk [vmem:[%s204] sm:$0xff] %vm203, %v202
    %s206 = scalar_lea.vmem [#allocation0], 2
    %v207 = vld [vmem:[%s206] ss:$8 sm:$0xf]
    %s208 = scalar_lea.vmem [#allocation0], 2
    %v209 = vld [vmem:[%s208] ss:$8 sm:$0xf0]
    %vm210 = vcmask 1047556
    %v211 = vsel %vm210, %v209, %v207
    %212 = vrot.lane.b32.xlu0 %v211, 64
    %v213 = vpop.permute.xlu0 %212
    %vm214 = vcmask 785920
    %215 = vst.msk [vmem:[%s1] sm:$0xff] %vm214, %v213
    %s216 = scalar_lea.vmem [#allocation0], 66
    %v217 = vld [vmem:[%s216] ss:$8 sm:$0xf]
    %s218 = scalar_lea.vmem [#allocation0], 66
    %v219 = vld [vmem:[%s218] ss:$8 sm:$0xf0]
    %vm220 = vcmask 1047556
    %v221 = vsel %vm220, %v219, %v217
    %222 = vrot.lane.b32.xlu0 %v221, 64
    %v223 = vpop.permute.xlu0 %222
    %vm224 = vcmask 785920
    %s225 = scalar_lea.vmem %s1, 8
    %226 = vst.msk [vmem:[%s225] sm:$0xff] %vm224, %v223
    %s227 = scalar_lea.vmem [#allocation0], 130
    %v228 = vld [vmem:[%s227] ss:$8 sm:$0xf]
    %s229 = scalar_lea.vmem [#allocation0], 130
    %v230 = vld [vmem:[%s229] ss:$8 sm:$0xf0]
    %vm231 = vcmask 1047556
    %v232 = vsel %vm231, %v230, %v228
    %233 = vrot.lane.b32.xlu0 %v232, 64
    %v234 = vpop.permute.xlu0 %233
    %vm235 = vcmask 785920
    %s236 = scalar_lea.vmem %s1, 16
    %237 = vst.msk [vmem:[%s236] sm:$0xff] %vm235, %v234
    %s238 = scalar_lea.vmem [#allocation0], 194
    %v239 = vld [vmem:[%s238] ss:$8 sm:$0xf]
    %s240 = scalar_lea.vmem [#allocation0], 194
    %v241 = vld [vmem:[%s240] ss:$8 sm:$0xf0]
    %vm242 = vcmask 1047556
    %v243 = vsel %vm242, %v241, %v239
    %244 = vrot.lane.b32.xlu0 %v243, 64
    %v245 = vpop.permute.xlu0 %244
    %vm246 = vcmask 785920
    %s247 = scalar_lea.vmem %s1, 24
    %248 = vst.msk [vmem:[%s247] sm:$0xff] %vm246, %v245
    %s249 = scalar_lea.vmem [#allocation0], 1
    %v250 = vld [vmem:[%s249] ss:$8 sm:$0xf]
    %s251 = scalar_lea.vmem [#allocation0], 1
    %v252 = vld [vmem:[%s251] ss:$8 sm:$0xf0]
    %vm253 = vcmask 1047556
    %v254 = vsel %vm253, %v252, %v250
    %255 = vrot.lane.b32.xlu0 %v254, 32
    %v256 = vpop.permute.xlu0 %255
    %vm257 = vcmask 523520
    %258 = vst.msk [vmem:[%s1] sm:$0xff] %vm257, %v256
    %s259 = scalar_lea.vmem [#allocation0], 65
    %v260 = vld [vmem:[%s259] ss:$8 sm:$0xf]
    %s261 = scalar_lea.vmem [#allocation0], 65
    %v262 = vld [vmem:[%s261] ss:$8 sm:$0xf0]
    %vm263 = vcmask 1047556
    %v264 = vsel %vm263, %v262, %v260
    %265 = vrot.lane.b32.xlu0 %v264, 32
    %v266 = vpop.permute.xlu0 %265
    %vm267 = vcmask 523520
    %s268 = scalar_lea.vmem %s1, 8
    %269 = vst.msk [vmem:[%s268] sm:$0xff] %vm267, %v266
    %s270 = scalar_lea.vmem [#allocation0], 129
    %v271 = vld [vmem:[%s270] ss:$8 sm:$0xf]
    %s272 = scalar_lea.vmem [#allocation0], 129
    %v273 = vld [vmem:[%s272] ss:$8 sm:$0xf0]
    %vm274 = vcmask 1047556
    %v275 = vsel %vm274, %v273, %v271
    %276 = vrot.lane.b32.xlu0 %v275, 32
    %v277 = vpop.permute.xlu0 %276
    %vm278 = vcmask 523520
    %s279 = scalar_lea.vmem %s1, 16
    %280 = vst.msk [vmem:[%s279] sm:$0xff] %vm278, %v277
    %s281 = scalar_lea.vmem [#allocation0], 193
    %v282 = vld [vmem:[%s281] ss:$8 sm:$0xf]
    %s283 = scalar_lea.vmem [#allocation0], 193
    %v284 = vld [vmem:[%s283] ss:$8 sm:$0xf0]
    %vm285 = vcmask 1047556
    %v286 = vsel %vm285, %v284, %v282
    %287 = vrot.lane.b32.xlu0 %v286, 32
    %v288 = vpop.permute.xlu0 %287
    %vm289 = vcmask 523520
    %s290 = scalar_lea.vmem %s1, 24
    %291 = vst.msk [vmem:[%s290] sm:$0xff] %vm289, %v288

// kernel: sfcntsp_forward.1
$region0: #{sfcntsp_forward.1}
  #allocation0 [shape = 'u32[]', space=smem, size = 0x4, offset = 0x4, fixed_abs, tag = 'smem constant byte address 0x4 - core index']
  #allocation1 [shape = 'u32[72,128]{1,0:T(1,128)}', space=vmem, size = 0x9000, scoped, tag = 'internal scratch']
  %s0 = inlined_call_operand.vmem [shape: f32[16,8,128], index: 0, kind: input, shape index: {}]
  %s1 = inlined_call_operand.vmem [shape: f32[16,8,128], index: 1, kind: input, shape index: {}]
  %s2 = inlined_call_operand.vmem [shape: f32[16,8,1], index: 2, kind: input, shape index: {}]
  %s3 = inlined_call_operand.vmem [shape: f32[16,1], index: 3, kind: input, shape index: {}]
  %s4 = inlined_call_operand.vmem [shape: f32[8,8], index: 4, kind: input, shape index: {}]
  %s5 = inlined_call_operand.vmem [shape: f32[32,128], index: 5, kind: input, shape index: {}]
  %s6 = inlined_call_operand.vmem [shape: f32[128,32], index: 6, kind: input, shape index: {}]
  %s7 = inlined_call_operand.hbm [shape: f32[16,128], index: 7, kind: output, shape index: {}]
  %s8 = sld [smem:[#allocation0]]
  $region61: #{sfcntsp_forward.1} parent=0
    _
  %s10 = ssub.s32 1, %s8
  %s11 = scalar_select 0, %s10, %s8
  $region1: #{sfcntsp_forward.1} parent=0
    #allocation2 [shape = 'u8[8192]{0}', space=vmem, size = 0x2000, scoped, tag = 'output window, operand 0']
    #allocation3 [shape = 's32[2]{0}', space=sflag, size = 0x8, scoped, tag = 'scoped memory for sfcntsp_forward.1']
    %12 = vsyncpa [#allocation3], 0
    %s13 = scalar_lea.sflag [#allocation3], 1
    %14 = vsyncpa %s13, 0
    loop: start=0, step=1, limit=4
    $region2: #{sfcntsp_forward.1} parent=1 // loop_pre_header
      _
    $region3: #{sfcntsp_forward.1} parent=1 // loop_header
      %s16 = sphi 0, %s20
      %p17 = scmp.ge.s32.totalorder %s16, 4
      %s26 = sphi 0, %s28
      %s29 = sphi 0, %s26
      %s30 = sphi 0, %s29
      %s46 = sphi 0, %s30
      %s52 = sphi 0, %s54
      %s55 = sphi 0, %s52
      %s56 = sphi 0, %s55
      %s72 = sphi 0, %s56
      %s78 = sphi 0, %s80
      %s81 = sphi 0, %s78
      %s82 = sphi 0, %s81
      %s98 = sphi 0, %s82
      %s104 = sphi 0, %s106
      %s107 = sphi 0, %s104
      %s108 = sphi 0, %s107
      %s124 = sphi 0, %s108
      %s128 = sphi 0, %s128
      %s130 = sphi 0, %s128
      %s131 = sphi 0, %s130
      %s145 = sphi 0, %s131
      %s149 = sphi 0, %s149
      %s151 = sphi 0, %s149
      %s152 = sphi 0, %s151
      %s166 = sphi 0, %s152
      %s170 = sphi 0, %s170
      %s172 = sphi 0, %s170
      %s173 = sphi 0, %s172
      %s187 = sphi 0, %s173
      %s193 = sphi 0, %s195
      %s196 = sphi 0, %s193
      %s197 = sphi 0, %s196
      %s213 = sphi 0, %s197
    $region4: #{sfcntsp_forward.1} parent=1 // loop_header_branch
      %19 = sbr.rel (%p17) target = $region8
    $region5: #{sfcntsp_forward.1} parent=1 // loop_body
      %s21 = ssub.s32 %s16, 1
      %s22 = ssub.s32 %s16, 2
      %s23 = sadd.s32 %s16, 1
      %s24 = ssub.s32 %s16, %s23
      %p25 = scmp.eq.s32.totalorder %s24, 0
      %s27 = sadd.s32 %s26, 1
      %s28 = scalar_select %p25, %s26, %s27
      %p31 = pneg %p25
      %p32 = scmp.eq.s32.totalorder %s16, 1
      %p33 = por %p31, %p32
      %p34 = scmp.ne.s32.totalorder %s26, %s29
      %p35 = scmp.eq.s32.totalorder %s16, 0
      %p36 = por %p34, %p35
      %p37 = scmp.ne.s32.totalorder %s26, %s29
      %p38 = scmp.eq.s32.totalorder %s21, 1
      %p39 = por %p37, %p38
      %p40 = scmp.ne.s32.totalorder %s29, %s30
      %p41 = scmp.eq.s32.totalorder %s21, 0
      %p42 = por %p40, %p41
      %p43 = scmp.ne.s32.totalorder %s29, %s30
      %p44 = scmp.eq.s32.totalorder %s22, 1
      %p45 = por %p43, %p44
      %p47 = scmp.ne.s32.totalorder %s30, %s46
      %p48 = scmp.eq.s32.totalorder %s22, 0
      %p49 = por %p47, %p48
      %s50 = ssub.s32 %s16, %s23
      %p51 = scmp.eq.s32.totalorder %s50, 0
      %s53 = sadd.s32 %s52, 1
      %s54 = scalar_select %p51, %s52, %s53
      %p57 = pneg %p51
      %p58 = scmp.eq.s32.totalorder %s16, 1
      %p59 = por %p57, %p58
      %p60 = scmp.ne.s32.totalorder %s52, %s55
      %p61 = scmp.eq.s32.totalorder %s16, 0
      %p62 = por %p60, %p61
      %p63 = scmp.ne.s32.totalorder %s52, %s55
      %p64 = scmp.eq.s32.totalorder %s21, 1
      %p65 = por %p63, %p64
      %p66 = scmp.ne.s32.totalorder %s55, %s56
      %p67 = scmp.eq.s32.totalorder %s21, 0
      %p68 = por %p66, %p67
      %p69 = scmp.ne.s32.totalorder %s55, %s56
      %p70 = scmp.eq.s32.totalorder %s22, 1
      %p71 = por %p69, %p70
      %p73 = scmp.ne.s32.totalorder %s56, %s72
      %p74 = scmp.eq.s32.totalorder %s22, 0
      %p75 = por %p73, %p74
      %s76 = ssub.s32 %s16, %s23
      %p77 = scmp.eq.s32.totalorder %s76, 0
      %s79 = sadd.s32 %s78, 1
      %s80 = scalar_select %p77, %s78, %s79
      %p83 = pneg %p77
      %p84 = scmp.eq.s32.totalorder %s16, 1
      %p85 = por %p83, %p84
      %p86 = scmp.ne.s32.totalorder %s78, %s81
      %p87 = scmp.eq.s32.totalorder %s16, 0
      %p88 = por %p86, %p87
      %p89 = scmp.ne.s32.totalorder %s78, %s81
      %p90 = scmp.eq.s32.totalorder %s21, 1
      %p91 = por %p89, %p90
      %p92 = scmp.ne.s32.totalorder %s81, %s82
      %p93 = scmp.eq.s32.totalorder %s21, 0
      %p94 = por %p92, %p93
      %p95 = scmp.ne.s32.totalorder %s81, %s82
      %p96 = scmp.eq.s32.totalorder %s22, 1
      %p97 = por %p95, %p96
      %p99 = scmp.ne.s32.totalorder %s82, %s98
      %p100 = scmp.eq.s32.totalorder %s22, 0
      %p101 = por %p99, %p100
      %s102 = ssub.s32 %s16, %s23
      %p103 = scmp.eq.s32.totalorder %s102, 0
      %s105 = sadd.s32 %s104, 1
      %s106 = scalar_select %p103, %s104, %s105
      %p109 = pneg %p103
      %p110 = scmp.eq.s32.totalorder %s16, 1
      %p111 = por %p109, %p110
      %p112 = scmp.ne.s32.totalorder %s104, %s107
      %p113 = scmp.eq.s32.totalorder %s16, 0
      %p114 = por %p112, %p113
      %p115 = scmp.ne.s32.totalorder %s104, %s107
      %p116 = scmp.eq.s32.totalorder %s21, 1
      %p117 = por %p115, %p116
      %p118 = scmp.ne.s32.totalorder %s107, %s108
      %p119 = scmp.eq.s32.totalorder %s21, 0
      %p120 = por %p118, %p119
      %p121 = scmp.ne.s32.totalorder %s107, %s108
      %p122 = scmp.eq.s32.totalorder %s22, 1
      %p123 = por %p121, %p122
      %p125 = scmp.ne.s32.totalorder %s108, %s124
      %p126 = scmp.eq.s32.totalorder %s22, 0
      %p127 = por %p125, %p126
      %s129 = sadd.s32 %s128, 1
      %p132 = scmp.eq.s32.totalorder %s16, 1
      %p133 = scmp.ne.s32.totalorder %s128, %s130
      %p134 = scmp.eq.s32.totalorder %s16, 0
      %p135 = por %p133, %p134
      %p136 = scmp.ne.s32.totalorder %s128, %s130
      %p137 = scmp.eq.s32.totalorder %s21, 1
      %p138 = por %p136, %p137
      %p139 = scmp.ne.s32.totalorder %s130, %s131
      %p140 = scmp.eq.s32.totalorder %s21, 0
      %p141 = por %p139, %p140
      %p142 = scmp.ne.s32.totalorder %s130, %s131
      %p143 = scmp.eq.s32.totalorder %s22, 1
      %p144 = por %p142, %p143
      %p146 = scmp.ne.s32.totalorder %s131, %s145
      %p147 = scmp.eq.s32.totalorder %s22, 0
      %p148 = por %p146, %p147
      %s150 = sadd.s32 %s149, 1
      %p153 = scmp.eq.s32.totalorder %s16, 1
      %p154 = scmp.ne.s32.totalorder %s149, %s151
      %p155 = scmp.eq.s32.totalorder %s16, 0
      %p156 = por %p154, %p155
      %p157 = scmp.ne.s32.totalorder %s149, %s151
      %p158 = scmp.eq.s32.totalorder %s21, 1
      %p159 = por %p157, %p158
      %p160 = scmp.ne.s32.totalorder %s151, %s152
      %p161 = scmp.eq.s32.totalorder %s21, 0
      %p162 = por %p160, %p161
      %p163 = scmp.ne.s32.totalorder %s151, %s152
      %p164 = scmp.eq.s32.totalorder %s22, 1
      %p165 = por %p163, %p164
      %p167 = scmp.ne.s32.totalorder %s152, %s166
      %p168 = scmp.eq.s32.totalorder %s22, 0
      %p169 = por %p167, %p168
      %s171 = sadd.s32 %s170, 1
      %p174 = scmp.eq.s32.totalorder %s16, 1
      %p175 = scmp.ne.s32.totalorder %s170, %s172
      %p176 = scmp.eq.s32.totalorder %s16, 0
      %p177 = por %p175, %p176
      %p178 = scmp.ne.s32.totalorder %s170, %s172
      %p179 = scmp.eq.s32.totalorder %s21, 1
      %p180 = por %p178, %p179
      %p181 = scmp.ne.s32.totalorder %s172, %s173
      %p182 = scmp.eq.s32.totalorder %s21, 0
      %p183 = por %p181, %p182
      %p184 = scmp.ne.s32.totalorder %s172, %s173
      %p185 = scmp.eq.s32.totalorder %s22, 1
      %p186 = por %p184, %p185
      %p188 = scmp.ne.s32.totalorder %s173, %s187
      %p189 = scmp.eq.s32.totalorder %s22, 0
      %p190 = por %p188, %p189
      %s191 = ssub.s32 %s16, %s23
      %p192 = scmp.eq.s32.totalorder %s191, 0
      %s194 = sadd.s32 %s193, 1
      %s195 = scalar_select %p192, %s193, %s194
      %p198 = pneg %p192
      %p199 = scmp.eq.s32.totalorder %s16, 1
      %p200 = por %p198, %p199
      %p201 = scmp.ne.s32.totalorder %s193, %s196
      %p202 = scmp.eq.s32.totalorder %s16, 0
      %p203 = por %p201, %p202
      %p204 = scmp.ne.s32.totalorder %s193, %s196
      %p205 = scmp.eq.s32.totalorder %s21, 1
      %p206 = por %p204, %p205
      %p207 = scmp.ne.s32.totalorder %s196, %s197
      %p208 = scmp.eq.s32.totalorder %s21, 0
      %p209 = por %p207, %p208
      %p210 = scmp.ne.s32.totalorder %s196, %s197
      %p211 = scmp.eq.s32.totalorder %s22, 1
      %p212 = por %p210, %p211
      %p214 = scmp.ne.s32.totalorder %s197, %s213
      %p215 = scmp.eq.s32.totalorder %s22, 0
      %p216 = por %p214, %p215
      %p217 = scmp.le.s32.totalorder 1, %s16
      %p218 = scmp.lt.s32.totalorder %s16, 3
      %p219 = pnand %p217, %p218
      %p220 = pneg %p219
      // Predicated region
      $region9: #{sfcntsp_forward.1} parent=5 // pred_check
        _
      $region10: #{sfcntsp_forward.1} parent=5 // pred_check_branch
        %222 = sbr.rel (%p219) target = $region12
      $region11: #{sfcntsp_forward.1} parent=5 // pred_region
        %s223 = ssub.s32 %s16, 1
        // Predicated region
        $region13: #{sfcntsp_forward.1} parent=11 // pred_check
          %p224 = pneg %p141
        $region14: #{sfcntsp_forward.1} parent=11 // pred_check_branch
          %226 = sbr.rel (%p224) target = $region16
        $region15: #{sfcntsp_forward.1} parent=11 // pred_region
          _
        $region16: #{sfcntsp_forward.1} parent=11 // pred_fallthru
          _
        // Predicated region
        $region17: #{sfcntsp_forward.1} parent=11 // pred_check
          %p227 = pneg %p162
        $region18: #{sfcntsp_forward.1} parent=11 // pred_check_branch
          %229 = sbr.rel (%p227) target = $region20
        $region19: #{sfcntsp_forward.1} parent=11 // pred_region
          _
        $region20: #{sfcntsp_forward.1} parent=11 // pred_fallthru
          _
        // Predicated region
        $region21: #{sfcntsp_forward.1} parent=11 // pred_check
          %p230 = pneg %p183
        $region22: #{sfcntsp_forward.1} parent=11 // pred_check_branch
          %232 = sbr.rel (%p230) target = $region24
        $region23: #{sfcntsp_forward.1} parent=11 // pred_region
          _
        $region24: #{sfcntsp_forward.1} parent=11 // pred_fallthru
          _
      $region12: #{sfcntsp_forward.1} parent=5 // pred_fallthru
        _
      %p233 = scmp.lt.s32.totalorder %s16, 2
      // Predicated region
      $region25: #{sfcntsp_forward.1} parent=5 // pred_check
        %p234 = pneg %p233
      $region26: #{sfcntsp_forward.1} parent=5 // pred_check_branch
        %236 = sbr.rel (%p234) target = $region28
      $region27: #{sfcntsp_forward.1} parent=5 // pred_region
        // Predicated region
        $region29: #{sfcntsp_forward.1} parent=27 // pred_check
          %p237 = pneg %p36
        $region30: #{sfcntsp_forward.1} parent=27 // pred_check_branch
          %239 = sbr.rel (%p237) target = $region32
        $region31: #{sfcntsp_forward.1} parent=27 // pred_region
          %s240 = smul.u32 8, %s16
          %p241 = scmp.lt.s32.totalorder %s240, 15
          %s242 = scalar_select %p241, %s240, 15
          %s243 = smul.addr %s242, 8
          %s244 = scalar_lea.vmem %s0, %s243
          %s245 = smul.u32 8, %s16
        $region32: #{sfcntsp_forward.1} parent=27 // pred_fallthru
          _
        // Predicated region
        $region33: #{sfcntsp_forward.1} parent=27 // pred_check
          %p246 = pneg %p62
        $region34: #{sfcntsp_forward.1} parent=27 // pred_check_branch
          %248 = sbr.rel (%p246) target = $region36
        $region35: #{sfcntsp_forward.1} parent=27 // pred_region
          %s249 = smul.u32 8, %s16
          %p250 = scmp.lt.s32.totalorder %s249, 15
          %s251 = scalar_select %p250, %s249, 15
          %s252 = smul.addr %s251, 8
          %s253 = scalar_lea.vmem %s1, %s252
          %s254 = smul.u32 8, %s16
        $region36: #{sfcntsp_forward.1} parent=27 // pred_fallthru
          _
        // Predicated region
        $region37: #{sfcntsp_forward.1} parent=27 // pred_check
          %p255 = pneg %p88
        $region38: #{sfcntsp_forward.1} parent=27 // pred_check_branch
          %257 = sbr.rel (%p255) target = $region40
        $region39: #{sfcntsp_forward.1} parent=27 // pred_region
          %s258 = smul.u32 8, %s16
          %p259 = scmp.lt.s32.totalorder %s258, 15
          %s260 = scalar_select %p259, %s258, 15
          %s261 = smul.addr %s260, 8
          %s262 = scalar_lea.vmem %s2, %s261
          %s263 = smul.u32 8, %s16
        $region40: #{sfcntsp_forward.1} parent=27 // pred_fallthru
          _
        // Predicated region
        $region41: #{sfcntsp_forward.1} parent=27 // pred_check
          %p264 = pneg %p114
        $region42: #{sfcntsp_forward.1} parent=27 // pred_check_branch
          %266 = sbr.rel (%p264) target = $region44
        $region43: #{sfcntsp_forward.1} parent=27 // pred_region
          %p267 = scmp.lt.s32.totalorder %s16, 1
          %s268 = scalar_select %p267, %s16, 1
          %s269 = smul.addr %s268, 8
          %s270 = scalar_lea.vmem %s3, %s269
        $region44: #{sfcntsp_forward.1} parent=27 // pred_fallthru
          _
      $region28: #{sfcntsp_forward.1} parent=5 // pred_fallthru
        _
      %p271 = scmp.le.s32.totalorder 1, %s16
      %p272 = scmp.lt.s32.totalorder %s16, 3
      %p273 = pnand %p271, %p272
      %p274 = pneg %p273
      // Predicated region
      $region45: #{sfcntsp_forward.1} parent=5 // pred_check
        _
      $region46: #{sfcntsp_forward.1} parent=5 // pred_check_branch
        %276 = sbr.rel (%p273) target = $region48
      $region47: #{sfcntsp_forward.1} parent=5 // pred_region
        %s277 = ssub.s32 %s16, 1
        %s278 = smul.u32 8, %s21
        %p279 = scmp.lt.s32.totalorder %s278, 15
        %s280 = scalar_select %p279, %s278, 15
        %s281 = smul.addr %s280, 8
        %s282 = scalar_lea.vmem %s0, %s281
        %p283 = pneg %p42
        %p284 = pneg %p39
        %s285 = smul.u32 8, %s21
        %p286 = scmp.lt.s32.totalorder %s285, 15
        %s287 = scalar_select %p286, %s285, 15
        %s288 = smul.addr %s287, 8
        %s289 = scalar_lea.vmem %s1, %s288
        %p290 = pneg %p68
        %p291 = pneg %p65
        %s292 = smul.u32 8, %s21
        %p293 = scmp.lt.s32.totalorder %s292, 15
        %s294 = scalar_select %p293, %s292, 15
        %s295 = smul.addr %s294, 8
        %s296 = scalar_lea.vmem %s2, %s295
        %p297 = pneg %p94
        %p298 = pneg %p91
        %p299 = scmp.lt.s32.totalorder %s21, 1
        %s300 = scalar_select %p299, %s21, 1
        %s301 = smul.addr %s300, 8
        %s302 = scalar_lea.vmem %s3, %s301
        %p303 = pneg %p120
        %p304 = pneg %p117
        %p305 = pneg %p141
        %p306 = pneg %p138
        %p307 = pneg %p162
        %p308 = pneg %p159
        %p309 = pneg %p183
        %p310 = pneg %p180
        %p311 = pneg %p209
        %p312 = pneg %p206
        %s313 = sand.u32 %s196, 1
        %s314 = scalar_lea.sflag [#allocation3], %s313
        %s315 = sand.u32 %s196, 1
        %s316 = smul.addr %s315, 8
        %s317 = scalar_lea.vmem [#allocation2], %s316
        %s318 = smul.u32 8, %s21
        %p319 = scmp.lt.s32.totalorder %s318, 15
        %s320 = scalar_select %p319, %s318, 15
        %s321 = smul.addr %s320, 8
        %s322 = scalar_lea.vmem %s0, %s321
        %s323 = smul.u32 8, %s21
        %s324 = smul.u32 8, %s21
        %p325 = scmp.lt.s32.totalorder %s324, 15
        %s326 = scalar_select %p325, %s324, 15
        %s327 = smul.addr %s326, 8
        %s328 = scalar_lea.vmem %s1, %s327
        %s329 = smul.u32 8, %s21
        %s330 = smul.u32 8, %s21
        %p331 = scmp.lt.s32.totalorder %s330, 15
        %s332 = scalar_select %p331, %s330, 15
        %s333 = smul.addr %s332, 8
        %s334 = scalar_lea.vmem %s2, %s333
        %s335 = smul.u32 8, %s21
        %p336 = scmp.lt.s32.totalorder %s21, 1
        %s337 = scalar_select %p336, %s21, 1
        %s338 = smul.addr %s337, 8
        %s339 = scalar_lea.vmem %s3, %s338
        %v340 = vld [vmem:[%s328] sm:$0xff]
        %v341 = vld [vmem:[%s328 + $0x8] sm:$0xff]
        %v342 = vld [vmem:[%s328 + $0x10] sm:$0xff]
        %v343 = vld [vmem:[%s328 + $0x18] sm:$0xff]
        %v344 = vld [vmem:[%s328 + $0x20] sm:$0xff]
        %v345 = vld [vmem:[%s328 + $0x28] sm:$0xff]
        %v346 = vld [vmem:[%s328 + $0x30] sm:$0xff]
        %v347 = vld [vmem:[%s328 + $0x38] sm:$0xff]
        %v348 = vld [vmem:[%s322] sm:$0xff]
        %v349 = vld [vmem:[%s322 + $0x8] sm:$0xff]
        %v350 = vld [vmem:[%s322 + $0x10] sm:$0xff]
        %v351 = vld [vmem:[%s322 + $0x18] sm:$0xff]
        %v352 = vld [vmem:[%s322 + $0x20] sm:$0xff]
        %v353 = vld [vmem:[%s322 + $0x28] sm:$0xff]
        %v354 = vld [vmem:[%s322 + $0x30] sm:$0xff]
        %v355 = vld [vmem:[%s322 + $0x38] sm:$0xff]
        %v356 = vmul.f32 %v348, %v340
        %v357 = vmul.f32 %v349, %v341
        %v358 = vmul.f32 %v350, %v342
        %v359 = vmul.f32 %v351, %v343
        %v360 = vmul.f32 %v352, %v344
        %v361 = vmul.f32 %v353, %v345
        %v362 = vmul.f32 %v354, %v346
        %v363 = vmul.f32 %v355, %v347
        %v364 = vld [vmem:[%s4] sm:$0xff]
        %vm365 = vcmask 64512
        %v367 = vsel %vm365, %v364, 0
        %369 = vmatpush.msra.mxu0 0.0
        %370 = vmatpush.msra.mxu0 0.0
        %371 = vmatpush.msra.mxu0 0.0
        %372 = vmatpush.msra.mxu0 0.0
        %373 = vmatpush.msra.mxu0 0.0
        %374 = vmatpush.msra.mxu0 0.0
        %375 = vmatpush.msra.mxu0 0.0
        %376 = vmatpush.msra.mxu0 0.0
        %377 = vmatpush.msra.mxu0 0.0
        %378 = vmatpush.msra.mxu0 0.0
        %379 = vmatpush.msra.mxu0 0.0
        %380 = vmatpush.msra.mxu0 0.0
        %381 = vmatpush.msra.mxu0 0.0
        %382 = vmatpush.msra.mxu0 0.0
        %383 = vmatpush.msra.mxu0 0.0
        %384 = vmatpush.msra.mxu0 %v356
        %385 = vmatmul.f32.gmra.mxu0 %v367
        %v386 = vpop.f32.mrf.mxu0
        %v387 = vadd.f32 0.0, %v386
        %388 = vdwg.mxu0
        %389 = vmatpush.msra.mxu0 0.0
        %390 = vmatpush.msra.mxu0 0.0
        %391 = vmatpush.msra.mxu0 0.0
        %392 = vmatpush.msra.mxu0 0.0
        %393 = vmatpush.msra.mxu0 0.0
        %394 = vmatpush.msra.mxu0 0.0
        %395 = vmatpush.msra.mxu0 0.0
        %396 = vmatpush.msra.mxu0 0.0
        %397 = vmatpush.msra.mxu0 0.0
        %398 = vmatpush.msra.mxu0 0.0
        %399 = vmatpush.msra.mxu0 0.0
        %400 = vmatpush.msra.mxu0 0.0
        %401 = vmatpush.msra.mxu0 0.0
        %402 = vmatpush.msra.mxu0 0.0
        %403 = vmatpush.msra.mxu0 0.0
        %404 = vmatpush.msra.mxu0 %v357
        %405 = vmatmul.f32.gmra.mxu0 %v367
        %v406 = vpop.f32.mrf.mxu0
        %v407 = vadd.f32 0.0, %v406
        %408 = vdwg.mxu0
        %409 = vmatpush.msra.mxu0 0.0
        %410 = vmatpush.msra.mxu0 0.0
        %411 = vmatpush.msra.mxu0 0.0
        %412 = vmatpush.msra.mxu0 0.0
        %413 = vmatpush.msra.mxu0 0.0
        %414 = vmatpush.msra.mxu0 0.0
        %415 = vmatpush.msra.mxu0 0.0
        %416 = vmatpush.msra.mxu0 0.0
        %417 = vmatpush.msra.mxu0 0.0
        %418 = vmatpush.msra.mxu0 0.0
        %419 = vmatpush.msra.mxu0 0.0
        %420 = vmatpush.msra.mxu0 0.0
        %421 = vmatpush.msra.mxu0 0.0
        %422 = vmatpush.msra.mxu0 0.0
        %423 = vmatpush.msra.mxu0 0.0
        %424 = vmatpush.msra.mxu0 %v358
        %425 = vmatmul.f32.gmra.mxu0 %v367
        %v426 = vpop.f32.mrf.mxu0
        %v427 = vadd.f32 0.0, %v426
        %428 = vdwg.mxu0
        %429 = vmatpush.msra.mxu0 0.0
        %430 = vmatpush.msra.mxu0 0.0
        %431 = vmatpush.msra.mxu0 0.0
        %432 = vmatpush.msra.mxu0 0.0
        %433 = vmatpush.msra.mxu0 0.0
        %434 = vmatpush.msra.mxu0 0.0
        %435 = vmatpush.msra.mxu0 0.0
        %436 = vmatpush.msra.mxu0 0.0
        %437 = vmatpush.msra.mxu0 0.0
        %438 = vmatpush.msra.mxu0 0.0
        %439 = vmatpush.msra.mxu0 0.0
        %440 = vmatpush.msra.mxu0 0.0
        %441 = vmatpush.msra.mxu0 0.0
        %442 = vmatpush.msra.mxu0 0.0
        %443 = vmatpush.msra.mxu0 0.0
        %444 = vmatpush.msra.mxu0 %v359
        %445 = vmatmul.f32.gmra.mxu0 %v367
        %v446 = vpop.f32.mrf.mxu0
        %v447 = vadd.f32 0.0, %v446
        %448 = vdwg.mxu0
        %449 = vmatpush.msra.mxu0 0.0
        %450 = vmatpush.msra.mxu0 0.0
        %451 = vmatpush.msra.mxu0 0.0
        %452 = vmatpush.msra.mxu0 0.0
        %453 = vmatpush.msra.mxu0 0.0
        %454 = vmatpush.msra.mxu0 0.0
        %455 = vmatpush.msra.mxu0 0.0
        %456 = vmatpush.msra.mxu0 0.0
        %457 = vmatpush.msra.mxu0 0.0
        %458 = vmatpush.msra.mxu0 0.0
        %459 = vmatpush.msra.mxu0 0.0
        %460 = vmatpush.msra.mxu0 0.0
        %461 = vmatpush.msra.mxu0 0.0
        %462 = vmatpush.msra.mxu0 0.0
        %463 = vmatpush.msra.mxu0 0.0
        %464 = vmatpush.msra.mxu0 %v360
        %465 = vmatmul.f32.gmra.mxu0 %v367
        %v466 = vpop.f32.mrf.mxu0
        %v467 = vadd.f32 0.0, %v466
        %468 = vdwg.mxu0
        %469 = vmatpush.msra.mxu0 0.0
        %470 = vmatpush.msra.mxu0 0.0
        %471 = vmatpush.msra.mxu0 0.0
        %472 = vmatpush.msra.mxu0 0.0
        %473 = vmatpush.msra.mxu0 0.0
        %474 = vmatpush.msra.mxu0 0.0
        %475 = vmatpush.msra.mxu0 0.0
        %476 = vmatpush.msra.mxu0 0.0
        %477 = vmatpush.msra.mxu0 0.0
        %478 = vmatpush.msra.mxu0 0.0
        %479 = vmatpush.msra.mxu0 0.0
        %480 = vmatpush.msra.mxu0 0.0
        %481 = vmatpush.msra.mxu0 0.0
        %482 = vmatpush.msra.mxu0 0.0
        %483 = vmatpush.msra.mxu0 0.0
        %484 = vmatpush.msra.mxu0 %v361
        %485 = vmatmul.f32.gmra.mxu0 %v367
        %v486 = vpop.f32.mrf.mxu0
        %v487 = vadd.f32 0.0, %v486
        %488 = vdwg.mxu0
        %489 = vmatpush.msra.mxu0 0.0
        %490 = vmatpush.msra.mxu0 0.0
        %491 = vmatpush.msra.mxu0 0.0
        %492 = vmatpush.msra.mxu0 0.0
        %493 = vmatpush.msra.mxu0 0.0
        %494 = vmatpush.msra.mxu0 0.0
        %495 = vmatpush.msra.mxu0 0.0
        %496 = vmatpush.msra.mxu0 0.0
        %497 = vmatpush.msra.mxu0 0.0
        %498 = vmatpush.msra.mxu0 0.0
        %499 = vmatpush.msra.mxu0 0.0
        %500 = vmatpush.msra.mxu0 0.0
        %501 = vmatpush.msra.mxu0 0.0
        %502 = vmatpush.msra.mxu0 0.0
        %503 = vmatpush.msra.mxu0 0.0
        %504 = vmatpush.msra.mxu0 %v362
        %505 = vmatmul.f32.gmra.mxu0 %v367
        %v506 = vpop.f32.mrf.mxu0
        %v507 = vadd.f32 0.0, %v506
        %508 = vdwg.mxu0
        %509 = vmatpush.msra.mxu0 0.0
        %510 = vmatpush.msra.mxu0 0.0
        %511 = vmatpush.msra.mxu0 0.0
        %512 = vmatpush.msra.mxu0 0.0
        %513 = vmatpush.msra.mxu0 0.0
        %514 = vmatpush.msra.mxu0 0.0
        %515 = vmatpush.msra.mxu0 0.0
        %516 = vmatpush.msra.mxu0 0.0
        %517 = vmatpush.msra.mxu0 0.0
        %518 = vmatpush.msra.mxu0 0.0
        %519 = vmatpush.msra.mxu0 0.0
        %520 = vmatpush.msra.mxu0 0.0
        %521 = vmatpush.msra.mxu0 0.0
        %522 = vmatpush.msra.mxu0 0.0
        %523 = vmatpush.msra.mxu0 0.0
        %524 = vmatpush.msra.mxu0 %v363
        %525 = vmatmul.f32.gmra.mxu0 %v367
        %v526 = vpop.f32.mrf.mxu0
        %v527 = vadd.f32 0.0, %v526
        %528 = vdwg.mxu0
        %v529 = vmul.f32 %v387, %v340
        %v530 = vmul.f32 %v407, %v341
        %v531 = vmul.f32 %v427, %v342
        %v532 = vmul.f32 %v447, %v343
        %v533 = vmul.f32 %v467, %v344
        %v534 = vmul.f32 %v487, %v345
        %v535 = vmul.f32 %v507, %v346
        %v536 = vmul.f32 %v527, %v347
        %v537 = vld [vmem:[%s334] sm:$0xff]
        %v538 = vld [vmem:[%s334 + $0x8] sm:$0xff]
        %v539 = vld [vmem:[%s334 + $0x10] sm:$0xff]
        %v540 = vld [vmem:[%s334 + $0x18] sm:$0xff]
        %v541 = vld [vmem:[%s334 + $0x20] sm:$0xff]
        %v542 = vld [vmem:[%s334 + $0x28] sm:$0xff]
        %v543 = vld [vmem:[%s334 + $0x30] sm:$0xff]
        %v544 = vld [vmem:[%s334 + $0x38] sm:$0xff]
        %546 = vset.pattern.permute.xlu0 0
        %547 = vperm.xlu0 %546, %v537
        %v548 = vpop.permute.xlu0 %547
        %551 = vset.pattern.permute.xlu0 0
        %552 = vperm.xlu0 %551, %v538
        %v553 = vpop.permute.xlu0 %552
        %556 = vset.pattern.permute.xlu0 0
        %557 = vperm.xlu0 %556, %v539
        %v558 = vpop.permute.xlu0 %557
        %561 = vset.pattern.permute.xlu0 0
        %562 = vperm.xlu0 %561, %v540
        %v563 = vpop.permute.xlu0 %562
        %566 = vset.pattern.permute.xlu0 0
        %567 = vperm.xlu0 %566, %v541
        %v568 = vpop.permute.xlu0 %567
        %571 = vset.pattern.permute.xlu0 0
        %572 = vperm.xlu0 %571, %v542
        %v573 = vpop.permute.xlu0 %572
        %576 = vset.pattern.permute.xlu0 0
        %577 = vperm.xlu0 %576, %v543
        %v578 = vpop.permute.xlu0 %577
        %581 = vset.pattern.permute.xlu0 0
        %582 = vperm.xlu0 %581, %v544
        %v583 = vpop.permute.xlu0 %582
        %v585 = vmul.f32 %v529, %v548
        %v586 = vmul.f32 %v530, %v553
        %v587 = vmul.f32 %v531, %v558
        %v588 = vmul.f32 %v532, %v563
        %v589 = vmul.f32 %v533, %v568
        %v590 = vmul.f32 %v534, %v573
        %v591 = vmul.f32 %v535, %v578
        %v592 = vmul.f32 %v536, %v583
        %v593 = vrot.slane %v585, 4
        %v594 = vadd.f32 %v585, %v593
        %v595 = vrot.slane %v594, 2
        %v596 = vadd.f32 %v594, %v595
        %v597 = vrot.slane %v596, 1
        %v598 = vadd.f32 %v596, %v597
        %v599 = vrot.slane %v586, 4
        %v600 = vadd.f32 %v586, %v599
        %v601 = vrot.slane %v600, 2
        %v602 = vadd.f32 %v600, %v601
        %v603 = vrot.slane %v602, 1
        %v604 = vadd.f32 %v602, %v603
        %v605 = vrot.slane %v587, 4
        %v606 = vadd.f32 %v587, %v605
        %v607 = vrot.slane %v606, 2
        %v608 = vadd.f32 %v606, %v607
        %v609 = vrot.slane %v608, 1
        %v610 = vadd.f32 %v608, %v609
        %v611 = vrot.slane %v588, 4
        %v612 = vadd.f32 %v588, %v611
        %v613 = vrot.slane %v612, 2
        %v614 = vadd.f32 %v612, %v613
        %v615 = vrot.slane %v614, 1
        %v616 = vadd.f32 %v614, %v615
        %v617 = vrot.slane %v589, 4
        %v618 = vadd.f32 %v589, %v617
        %v619 = vrot.slane %v618, 2
        %v620 = vadd.f32 %v618, %v619
        %v621 = vrot.slane %v620, 1
        %v622 = vadd.f32 %v620, %v621
        %v623 = vrot.slane %v590, 4
        %v624 = vadd.f32 %v590, %v623
        %v625 = vrot.slane %v624, 2
        %v626 = vadd.f32 %v624, %v625
        %v627 = vrot.slane %v626, 1
        %v628 = vadd.f32 %v626, %v627
        %v629 = vrot.slane %v591, 4
        %v630 = vadd.f32 %v591, %v629
        %v631 = vrot.slane %v630, 2
        %v632 = vadd.f32 %v630, %v631
        %v633 = vrot.slane %v632, 1
        %v634 = vadd.f32 %v632, %v633
        %v635 = vrot.slane %v592, 4
        %v636 = vadd.f32 %v592, %v635
        %v637 = vrot.slane %v636, 2
        %v638 = vadd.f32 %v636, %v637
        %v639 = vrot.slane %v638, 1
        %v640 = vadd.f32 %v638, %v639
        %v641 = vld [vmem:[%s5] sm:$0xff]
        %v642 = vld [vmem:[%s5 + $0x8] sm:$0xff]
        %v643 = vld [vmem:[%s5 + $0x10] sm:$0xff]
        %v644 = vld [vmem:[%s5 + $0x18] sm:$0xff]
        %vm653 = vcmask 1041409
        %v654 = vsel %vm653, %v604, %v598
        %vm655 = vcmask 1042434
        %v656 = vsel %vm655, %v610, %v654
        %vm657 = vcmask 1043459
        %v658 = vsel %vm657, %v616, %v656
        %vm659 = vcmask 1044484
        %v660 = vsel %vm659, %v622, %v658
        %vm661 = vcmask 1045509
        %v662 = vsel %vm661, %v628, %v660
        %vm663 = vcmask 1046534
        %v664 = vsel %vm663, %v634, %v662
        %vm665 = vcmask 1047559
        %v666 = vsel %vm665, %v640, %v664
        %668 = vmatpush.xpose.msra.mxu0 0.0
        %669 = vmatpush.xpose.msra.mxu0 0.0
        %670 = vmatpush.xpose.msra.mxu0 0.0
        %671 = vmatpush.xpose.msra.mxu0 0.0
        %672 = vmatpush.xpose.msra.mxu0 0.0
        %673 = vmatpush.xpose.msra.mxu0 0.0
        %674 = vmatpush.xpose.msra.mxu0 0.0
        %675 = vmatpush.xpose.msra.mxu0 0.0
        %676 = vmatpush.xpose.msra.mxu0 0.0
        %677 = vmatpush.xpose.msra.mxu0 0.0
        %678 = vmatpush.xpose.msra.mxu0 0.0
        %679 = vmatpush.xpose.msra.mxu0 0.0
        %680 = vmatpush.xpose.msra.mxu0 %v644
        %681 = vmatpush.xpose.msra.mxu0 %v643
        %682 = vmatpush.xpose.msra.mxu0 %v642
        %683 = vmatpush.xpose.msra.mxu0 %v641
        %684 = vmatmul.f32.gmra.mxu0 %v666
        %v685 = vpop.f32.mrf.mxu0
        %v686 = vadd.f32 0.0, %v685
        %687 = vdwg.mxu0
        %v688 = vld [vmem:[%s339] sm:$0xff]
        %690 = vset.pattern.permute.xlu0 0
        %691 = vperm.xlu0 %690, %v688
        %v692 = vpop.permute.xlu0 %691
        %v694 = vmul.f32 %v686, %v692
        %v695 = vld [vmem:[%s6] sm:$0xff]
        %v696 = vld [vmem:[%s6 + $0x8] sm:$0xff]
        %v697 = vld [vmem:[%s6 + $0x10] sm:$0xff]
        %v698 = vld [vmem:[%s6 + $0x18] sm:$0xff]
        %v699 = vld [vmem:[%s6 + $0x20] sm:$0xff]
        %v700 = vld [vmem:[%s6 + $0x28] sm:$0xff]
        %v701 = vld [vmem:[%s6 + $0x30] sm:$0xff]
        %v702 = vld [vmem:[%s6 + $0x38] sm:$0xff]
        %v703 = vld [vmem:[%s6 + $0x40] sm:$0xff]
        %v704 = vld [vmem:[%s6 + $0x48] sm:$0xff]
        %v705 = vld [vmem:[%s6 + $0x50] sm:$0xff]
        %v706 = vld [vmem:[%s6 + $0x58] sm:$0xff]
        %v707 = vld [vmem:[%s6 + $0x60] sm:$0xff]
        %v708 = vld [vmem:[%s6 + $0x68] sm:$0xff]
        %v709 = vld [vmem:[%s6 + $0x70] sm:$0xff]
        %v710 = vld [vmem:[%s6 + $0x78] sm:$0xff]
        %vm711 = vcmask 261120
        %v713 = vsel %vm711, %v694, 0
        %v716 = vsel %vm711, %v695, 0
        %v719 = vsel %vm711, %v696, 0
        %v722 = vsel %vm711, %v697, 0
        %v725 = vsel %vm711, %v698, 0
        %v728 = vsel %vm711, %v699, 0
        %v731 = vsel %vm711, %v700, 0
        %v734 = vsel %vm711, %v701, 0
        %v737 = vsel %vm711, %v702, 0
        %v740 = vsel %vm711, %v703, 0
        %v743 = vsel %vm711, %v704, 0
        %v746 = vsel %vm711, %v705, 0
        %v749 = vsel %vm711, %v706, 0
        %v752 = vsel %vm711, %v707, 0
        %v755 = vsel %vm711, %v708, 0
        %v758 = vsel %vm711, %v709, 0
        %v761 = vsel %vm711, %v710, 0
        %763 = vmatpush.xpose.msra.mxu0 %v761
        %764 = vmatpush.xpose.msra.mxu0 %v758
        %765 = vmatpush.xpose.msra.mxu0 %v755
        %766 = vmatpush.xpose.msra.mxu0 %v752
        %767 = vmatpush.xpose.msra.mxu0 %v749
        %768 = vmatpush.xpose.msra.mxu0 %v746
        %769 = vmatpush.xpose.msra.mxu0 %v743
        %770 = vmatpush.xpose.msra.mxu0 %v740
        %771 = vmatpush.xpose.msra.mxu0 %v737
        %772 = vmatpush.xpose.msra.mxu0 %v734
        %773 = vmatpush.xpose.msra.mxu0 %v731
        %774 = vmatpush.xpose.msra.mxu0 %v728
        %775 = vmatpush.xpose.msra.mxu0 %v725
        %776 = vmatpush.xpose.msra.mxu0 %v722
        %777 = vmatpush.xpose.msra.mxu0 %v719
        %778 = vmatpush.xpose.msra.mxu0 %v716
        %779 = vmatmul.f32.gmra.mxu0 %v713
        %v780 = vpop.f32.mrf.mxu0
        %v781 = vadd.f32 0.0, %v780
        %782 = vdwg.mxu0
        %783 = vst [vmem:[%s317] sm:$0xff] %v781
        %s784 = sand.u32 %s196, 1
        %s785 = scalar_lea.sflag [#allocation3], %s784
        %s786 = sand.u32 %s196, 1
        %s787 = smul.addr %s786, 8
        %s788 = scalar_lea.vmem [#allocation2], %s787
        // Predicated region
        $region49: #{sfcntsp_forward.1} parent=47 // pred_check
          %p789 = pneg %p206
        $region50: #{sfcntsp_forward.1} parent=47 // pred_check_branch
          %791 = sbr.rel (%p789) target = $region52
        $region51: #{sfcntsp_forward.1} parent=47 // pred_region
          %793 = vsyncadd %s785, 0
          %s794 = smul.addr %s21, 8
          %s795 = scalar_lea.hbm %s7, %s794
          %s797 = sshll.u32 %s788, 4
          %s798 = int_to_ptr.vmem [resolvable:$true] %s797
          %s799 = sshll.u32 %s795, 4
          %s800 = int_to_ptr.hbm [resolvable:$true] %s799
          %802 = dma.vmem_to_hbm [thread:$0]  %s798, 128, %s800, %s785
        $region52: #{sfcntsp_forward.1} parent=47 // pred_fallthru
          _
      $region48: #{sfcntsp_forward.1} parent=5 // pred_fallthru
        _
      %p803 = scmp.le.s32.totalorder 2, %s16
      // Predicated region
      $region53: #{sfcntsp_forward.1} parent=5 // pred_check
        %p804 = pneg %p803
      $region54: #{sfcntsp_forward.1} parent=5 // pred_check_branch
        %806 = sbr.rel (%p804) target = $region56
      $region55: #{sfcntsp_forward.1} parent=5 // pred_region
        %s807 = ssub.s32 %s16, 2
        // Predicated region
        $region57: #{sfcntsp_forward.1} parent=55 // pred_check
          %p808 = pneg %p212
        $region58: #{sfcntsp_forward.1} parent=55 // pred_check_branch
          %810 = sbr.rel (%p808) target = $region60
        $region59: #{sfcntsp_forward.1} parent=55 // pred_region
          %s811 = sand.u32 %s197, 1
          %s812 = scalar_lea.sflag [#allocation3], %s811
          %s813 = sand.u32 %s197, 1
          %s814 = smul.addr %s813, 8
          %s815 = scalar_lea.vmem [#allocation2], %s814
          %817 = dma.done %s812, 128
        $region60: #{sfcntsp_forward.1} parent=55 // pred_fallthru
          _
      $region56: #{sfcntsp_forward.1} parent=5 // pred_fallthru
        _
    $region6: #{sfcntsp_forward.1} parent=1 // loop_footer
      %s20 = sadd.s32 1, %s16
    $region7: #{sfcntsp_forward.1} parent=1 // loop_footer_branch
      %15 = sbr.rel target = $region3
    $region8: #{sfcntsp_forward.1} parent=1 // loop_exit
      _
    %818 = vsyncpa [#allocation3], 1
    %s819 = scalar_lea.sflag [#allocation3], 1
    %820 = vsyncpa %s819, 1

</llo_original>
